<compile_context>
chip_gen: v6e
topology: v6e:2x2x1
jax: 0.10.0
libtpu: 0.0.40
codegen_flags: <defaults>
</compile_context>

<pallas_src>
import functools
import math

import jax
import jax.numpy as jnp
from jax.experimental import pallas as pl
from jax.experimental.pallas import tpu as pltpu

NEG_INF = -1e30          # Python float: safe to bake into kernels (no captured array)
LN_EPS = 1e-5
MAX_TM = 256             # matmul row tile
MAX_TN = 512             # matmul col tile
MAX_TK = 1024            # matmul contraction tile (deep K -> fewer acc round trips)
MAX_LN_ROWS = 1024       # mem-bound row kernels want big tiles (~85% HBM roofline)
CE_BLOCK_BYTES = 2 * 1024 * 1024   # bound the (rows, V) CE tile for small-VMEM chips


# --------------------------------------------------------------------------
# small helpers
# --------------------------------------------------------------------------

def _round_up(x, m):
    return (x + m - 1) // m * m


def _pick_tile(dim, max_tile):
    """Return (tile, padded_dim).  If dim <= max_tile the block covers the full
    (padded) extent, which is always a legal block shape; otherwise max_tile must
    respect the (8,128) divisibility for the dim position it is used in."""
    if dim <= max_tile:
        return dim, dim
    return max_tile, _round_up(dim, max_tile)


def _pad2(x, rows, cols):
    r, c = x.shape
    if r == rows and c == cols:
        return x
    return jnp.pad(x, ((0, rows - r), (0, cols - c)))


# --------------------------------------------------------------------------
# tiled linear (MXU matmul + bias + optional ReLU), bf16 operands / f32 acc
# --------------------------------------------------------------------------

def _linear_kernel(x_ref, w_ref, b_ref, o_ref, acc_ref, *, activation):
    @pl.when(pl.program_id(2) == 0)
    def _():
        acc_ref[...] = jnp.zeros_like(acc_ref)

    acc_ref[...] += jnp.dot(x_ref[...], w_ref[...],
                            preferred_element_type=jnp.float32)

    @pl.when(pl.program_id(2) == pl.num_programs(2) - 1)
    def _():
        y = acc_ref[...] + b_ref[...]
        if activation == "relu":
            y = jnp.maximum(y, 0.0)
        o_ref[...] = y.astype(o_ref.dtype)


def linear(x, w, b, activation=None, out_dtype=jnp.bfloat16):
    """x: (..., K) @ w: (K, N) + b: (N,). bf16 operands, f32 accumulate."""
    lead, K = x.shape[:-1], x.shape[-1]
    N = w.shape[-1]
    x2 = x.reshape(-1, K).astype(jnp.bfloat16)        # cast BEFORE padding
    M = x2.shape[0]

    tm, Mp = _pick_tile(M, MAX_TM)
    tn, Np = _pick_tile(N, MAX_TN)
    tk, Kp = _pick_tile(K, MAX_TK)

    xb = _pad2(x2, Mp, Kp)
    wb = _pad2(w.astype(jnp.bfloat16), Kp, Np)        # no-op cast: weights stored bf16
    bb = _pad2(b.reshape(1, N).astype(jnp.float32), 1, Np)

    out = pl.pallas_call(
        functools.partial(_linear_kernel, activation=activation),
        out_shape=jax.ShapeDtypeStruct((Mp, Np), out_dtype),
        grid=(Mp // tm, Np // tn, Kp // tk),
        in_specs=[pl.BlockSpec((tm, tk), lambda i, j, k: (i, k)),
                  pl.BlockSpec((tk, tn), lambda i, j, k: (k, j)),
                  pl.BlockSpec((1, tn), lambda i, j, k: (0, j))],
        out_specs=pl.BlockSpec((tm, tn), lambda i, j, k: (i, j)),
        scratch_shapes=[pltpu.VMEM((tm, tn), jnp.float32)],
        compiler_params=pltpu.CompilerParams(
            dimension_semantics=("parallel", "parallel", "arbitrary")),
    )(xb, wb, bb)
    return out[:M, :N].reshape(lead + (N,))


# --------------------------------------------------------------------------
# fused linear + residual add + LayerNorm (epilogue of the matmul)
# --------------------------------------------------------------------------

def _linear_add_ln_kernel(x_ref, w_ref, b_ref, r_ref, g_ref, bt_ref, o_ref, acc_ref):
    @pl.when(pl.program_id(2) == 0)
    def _():
        acc_ref[...] = jnp.zeros_like(acc_ref)

    acc_ref[...] += jnp.dot(x_ref[...], w_ref[...],
                            preferred_element_type=jnp.float32)

    @pl.when(pl.program_id(2) == pl.num_programs(2) - 1)
    def _():
        h = acc_ref[...] + b_ref[...] + r_ref[...].astype(jnp.float32)
        mu = jnp.mean(h, axis=-1, keepdims=True)
        d = h - mu
        var = jnp.mean(d * d, axis=-1, keepdims=True)
        y = d * jax.lax.rsqrt(var + LN_EPS) * g_ref[...] + bt_ref[...]
        o_ref[...] = y.astype(o_ref.dtype)


def linear_add_ln(x, w, b, residual, gamma, beta, out_dtype=jnp.bfloat16):
    """y = LayerNorm(residual + (x @ w + b)).  Needs the full output row resident
    in one column block (N <= MAX_TN); otherwise falls back to two kernels."""
    N = w.shape[-1]
    if N > MAX_TN:
        return add_layer_norm(residual, linear(x, w, b, out_dtype=jnp.float32),
                              gamma, beta, out_dtype=out_dtype)
    lead, K = x.shape[:-1], x.shape[-1]
    x2 = x.reshape(-1, K).astype(jnp.bfloat16)
    r2 = residual.reshape(-1, N).astype(jnp.bfloat16)
    M = x2.shape[0]
    tm, Mp = _pick_tile(M, MAX_TM)
    tk, Kp = _pick_tile(K, MAX_TK)
    tn = N                                    # whole row block -> LN in epilogue

    xb = _pad2(x2, Mp, Kp)
    wb = _pad2(w.astype(jnp.bfloat16), Kp, N)
    bb = b.reshape(1, N).astype(jnp.float32)
    rb = _pad2(r2, Mp, N)
    gb = gamma.reshape(1, N).astype(jnp.float32)
    btb = beta.reshape(1, N).astype(jnp.float32)

    out = pl.pallas_call(
        _linear_add_ln_kernel,
        out_shape=jax.ShapeDtypeStruct((Mp, N), out_dtype),
        grid=(Mp // tm, 1, Kp // tk),
        in_specs=[pl.BlockSpec((tm, tk), lambda i, j, k: (i, k)),
                  pl.BlockSpec((tk, tn), lambda i, j, k: (k, j)),
                  pl.BlockSpec((1, tn), lambda i, j, k: (0, j)),
                  pl.BlockSpec((tm, tn), lambda i, j, k: (i, j)),
                  pl.BlockSpec((1, tn), lambda i, j, k: (0, j)),
                  pl.BlockSpec((1, tn), lambda i, j, k: (0, j))],
        out_specs=pl.BlockSpec((tm, tn), lambda i, j, k: (i, j)),
        scratch_shapes=[pltpu.VMEM((tm, tn), jnp.float32)],
        compiler_params=pltpu.CompilerParams(
            dimension_semantics=("parallel", "parallel", "arbitrary")),
    )(xb, wb, bb, rb, gb, btb)
    return out[:M].reshape(lead + (N,))


# --------------------------------------------------------------------------
# LayerNorm (and add+LN fallback), bf16 in / out, f32 math
# --------------------------------------------------------------------------

def _ln_kernel(x_ref, g_ref, b_ref, o_ref):
    h = x_ref[...].astype(jnp.float32)
    mu = jnp.mean(h, axis=-1, keepdims=True)
    d = h - mu
    var = jnp.mean(d * d, axis=-1, keepdims=True)
    o_ref[...] = (d * jax.lax.rsqrt(var + LN_EPS) * g_ref[...]
                  + b_ref[...]).astype(o_ref.dtype)


def _add_ln_kernel(x_ref, r_ref, g_ref, b_ref, o_ref):
    h = x_ref[...].astype(jnp.float32) + r_ref[...].astype(jnp.float32)
    mu = jnp.mean(h, axis=-1, keepdims=True)
    d = h - mu
    var = jnp.mean(d * d, axis=-1, keepdims=True)
    o_ref[...] = (d * jax.lax.rsqrt(var + LN_EPS) * g_ref[...]
                  + b_ref[...]).astype(o_ref.dtype)


def layer_norm(x, g, b, out_dtype=jnp.bfloat16):
    lead, H = x.shape[:-1], x.shape[-1]
    x2 = x.reshape(-1, H).astype(jnp.bfloat16)
    M = x2.shape[0]
    tm, Mp = _pick_tile(M, MAX_LN_ROWS)
    out = pl.pallas_call(
        _ln_kernel,
        out_shape=jax.ShapeDtypeStruct((Mp, H), out_dtype),
        grid=(Mp // tm,),
        in_specs=[pl.BlockSpec((tm, H), lambda i: (i, 0)),
                  pl.BlockSpec((1, H), lambda i: (0, 0)),
                  pl.BlockSpec((1, H), lambda i: (0, 0))],
        out_specs=pl.BlockSpec((tm, H), lambda i: (i, 0)),
        compiler_params=pltpu.CompilerParams(dimension_semantics=("parallel",)),
    )(_pad2(x2, Mp, H),
      g.reshape(1, H).astype(jnp.float32),
      b.reshape(1, H).astype(jnp.float32))
    return out[:M].reshape(lead + (H,))


def add_layer_norm(x, res, g, b, out_dtype=jnp.bfloat16):
    """Fallback (only used when N > MAX_TN makes epilogue fusion impossible)."""
    lead, H = x.shape[:-1], x.shape[-1]
    x2 = x.reshape(-1, H).astype(jnp.bfloat16)
    r2 = res.reshape(-1, H).astype(jnp.bfloat16)
    M = x2.shape[0]
    tm, Mp = _pick_tile(M, MAX_LN_ROWS)
    out = pl.pallas_call(
        _add_ln_kernel,
        out_shape=jax.ShapeDtypeStruct((Mp, H), out_dtype),
        grid=(Mp // tm,),
        in_specs=[pl.BlockSpec((tm, H), lambda i: (i, 0)),
                  pl.BlockSpec((tm, H), lambda i: (i, 0)),
                  pl.BlockSpec((1, H), lambda i: (0, 0)),
                  pl.BlockSpec((1, H), lambda i: (0, 0))],
        out_specs=pl.BlockSpec((tm, H), lambda i: (i, 0)),
        compiler_params=pltpu.CompilerParams(dimension_semantics=("parallel",)),
    )(_pad2(x2, Mp, H), _pad2(r2, Mp, H),
      g.reshape(1, H).astype(jnp.float32),
      b.reshape(1, H).astype(jnp.float32))
    return out[:M].reshape(lead + (H,))


# --------------------------------------------------------------------------
# attention: grid over batch; all heads per grid step, heads split in-kernel
# from the fused QKV / KV linear outputs (no XLA head transposes), lane-dense
# (T, H) output.  Masks built in-kernel / passed as a tiny (B,1,Tk) bias.
# --------------------------------------------------------------------------

def _mha_heads(q2, k2, v2, bias, nh, dh, causal, scale):
    """q2 (Tq,H), k2/v2 (Tk,H) bf16 values; bias (1,Tk) f32 additive.
    Static per-head lane slices (nh small); returns (Tq, H) f32."""
    outs = []
    for h in range(nh):
        lo, hi = h * dh, (h + 1) * dh
        qh, kh, vh = q2[:, lo:hi], k2[:, lo:hi], v2[:, lo:hi]
        s = jax.lax.dot_general(qh, kh, (((1,), (1,)), ((), ())),
                                preferred_element_type=jnp.float32) * scale
        s = s + bias
        if causal:
            row = jax.lax.broadcasted_iota(jnp.int32, s.shape, 0)
            col = jax.lax.broadcasted_iota(jnp.int32, s.shape, 1)
            s = jnp.where(col <= row, s, NEG_INF)
        m = jnp.max(s, axis=-1, keepdims=True)
        p = jnp.exp(s - m)
        den = jnp.sum(p, axis=-1, keepdims=True)
        o = jnp.dot(p.astype(vh.dtype), vh, preferred_element_type=jnp.float32)
        outs.append(o / den)                     # exact normalization
    return jnp.concatenate(outs, axis=-1)


def _self_attn_kernel(qkv_ref, kp_ref, o_ref, *, nh, causal, scale, hidden):
    qkv = qkv_ref[...]                           # (T, 3H) bf16
    q2 = qkv[:, :hidden]
    k2 = qkv[:, hidden:2 * hidden]
    v2 = qkv[:, 2 * hidden:]
    o = _mha_heads(q2, k2, v2, kp_ref[...], nh, hidden // nh, causal, scale)
    o_ref[...] = o.astype(o_ref.dtype)


def _cross_attn_kernel(q_ref, kv_ref, kp_ref, o_ref, *, nh, scale, hidden):
    q2 = q_ref[...]                              # (T, H) bf16
    kv = kv_ref[...]                             # (S, 2H) bf16
    k2 = kv[:, :hidden]
    v2 = kv[:, hidden:]
    o = _mha_heads(q2, k2, v2, kp_ref[...], nh, hidden // nh, False, scale)
    o_ref[...] = o.astype(o_ref.dtype)


# TODO(synk): for long Tk, switch to an online-softmax (flash) KV-tiled loop so
# the full (Tq, Tk) f32 score tile is never materialized (v7x VMEM headroom).

def attention_self(qkv, kp_bias, nh, causal):
    """qkv: (B, T, 3H) straight from the fused QKV linear; kp_bias: (B,1,T) f32.
    Returns (B, T, H) bf16 with heads concatenated lane-dense."""
    B, T, threeH = qkv.shape
    H = threeH // 3
    scale = 1.0 / math.sqrt(H // nh)
    return pl.pallas_call(
        functools.partial(_self_attn_kernel, nh=nh, causal=causal,
                          scale=scale, hidden=H),
        out_shape=jax.ShapeDtypeStruct((B, T, H), jnp.bfloat16),
        grid=(B,),
        in_specs=[pl.BlockSpec((None, T, threeH), lambda b: (b, 0, 0)),
                  pl.BlockSpec((None, 1, T), lambda b: (b, 0, 0))],
        out_specs=pl.BlockSpec((None, T, H), lambda b: (b, 0, 0)),
        compiler_params=pltpu.CompilerParams(dimension_semantics=("parallel",)),
    )(qkv.astype(jnp.bfloat16), kp_bias.astype(jnp.float32))


def attention_cross(q, kv, kp_bias, nh):
    """q: (B, T, H); kv: (B, S, 2H) fused K/V linear output; kp_bias: (B,1,S)."""
    B, T, H = q.shape
    S = kv.shape[1]
    scale = 1.0 / math.sqrt(H // nh)
    return pl.pallas_call(
        functools.partial(_cross_attn_kernel, nh=nh, scale=scale, hidden=H),
        out_shape=jax.ShapeDtypeStruct((B, T, H), jnp.bfloat16),
        grid=(B,),
        in_specs=[pl.BlockSpec((None, T, H), lambda b: (b, 0, 0)),
                  pl.BlockSpec((None, S, 2 * H), lambda b: (b, 0, 0)),
                  pl.BlockSpec((None, 1, S), lambda b: (b, 0, 0))],
        out_specs=pl.BlockSpec((None, T, H), lambda b: (b, 0, 0)),
        compiler_params=pltpu.CompilerParams(dimension_semantics=("parallel",)),
    )(q.astype(jnp.bfloat16), kv.astype(jnp.bfloat16), kp_bias.astype(jnp.float32))


# --------------------------------------------------------------------------
# cross-entropy with ignore_index, row-tiled accumulation (VMEM-bounded tile)
# --------------------------------------------------------------------------

def _ce_kernel(logits_ref, labels_ref, sum_ref, cnt_ref, *, pad_id):
    @pl.when(pl.program_id(0) == 0)
    def _():
        sum_ref[...] = jnp.zeros_like(sum_ref)
        cnt_ref[...] = jnp.zeros_like(cnt_ref)

    logits = logits_ref[...].astype(jnp.float32)              # (rows, V)
    labels = labels_ref[...]                                  # (rows, 1) int32
    m = jnp.max(logits, axis=-1, keepdims=True)
    lse = jnp.log(jnp.sum(jnp.exp(logits - m), axis=-1, keepdims=True)) + m
    col = jax.lax.broadcasted_iota(jnp.int32, logits.shape, 1)
    gold = jnp.sum(jnp.where(col == labels, logits, 0.0), axis=-1, keepdims=True)
    valid = (labels != pad_id).astype(jnp.float32)
    sum_ref[...] += jnp.sum((lse - gold) * valid, keepdims=True)
    cnt_ref[...] += jnp.sum(valid, keepdims=True)


def cross_entropy_mean(logits, labels, pad_id):
    """Mean CE over labels != pad_id (nn.CrossEntropyLoss(ignore_index=pad_id))."""
    N, V = logits.shape
    # bound the (rows, V) f32 tile so it fits comfortably in scoped VMEM (v7x)
    cap = max(8, (CE_BLOCK_BYTES // (V * 4)) // 8 * 8)
    trows, Np = _pick_tile(N, min(512, cap))
    lg = jnp.pad(logits.astype(jnp.float32), ((0, Np - N), (0, 0)))
    lb = jnp.pad(labels.astype(jnp.int32), ((0, Np - N),),
                 constant_values=pad_id).reshape(Np, 1)
    s, c = pl.pallas_call(
        functools.partial(_ce_kernel, pad_id=pad_id),
        out_shape=(jax.ShapeDtypeStruct((1, 1), jnp.float32),
                   jax.ShapeDtypeStruct((1, 1), jnp.float32)),
        grid=(Np // trows,),
        in_specs=[pl.BlockSpec((trows, V), lambda i: (i, 0)),
                  pl.BlockSpec((trows, 1), lambda i: (i, 0))],
        out_specs=(pl.BlockSpec((1, 1), lambda i: (0, 0)),
                   pl.BlockSpec((1, 1), lambda i: (0, 0))),
        compiler_params=pltpu.CompilerParams(dimension_semantics=("arbitrary",)),
    )(lg, lb)
    return s[0, 0] / jnp.maximum(c[0, 0], 1.0)   # guard: all-pad -> 0, not NaN


# --------------------------------------------------------------------------
# transformer glue (built from the Pallas kernels above)
# --------------------------------------------------------------------------

def self_attn_block(x, p, nh, kp_bias, causal):
    qkv = linear(x, p['w_qkv'], p['b_qkv'])                 # (B, T, 3H) bf16
    return attention_self(qkv, kp_bias, nh, causal)         # (B, T, H)  bf16


def cross_attn_block(x, mem, p, nh, kp_bias):
    q = linear(x, p['wq'], p['bq'])                          # (B, T, H)
    kv = linear(mem, p['w_kv'], p['b_kv'])                   # (B, S, 2H)
    return attention_cross(q, kv, kp_bias, nh)               # (B, T, H)


def encoder_layer(x, p, nh, kp_bias):
    a = self_attn_block(x, p['attn'], nh, kp_bias, causal=False)
    x = linear_add_ln(a, p['attn']['wo'], p['attn']['bo'], x, p['ln1_g'], p['ln1_b'])
    h = linear(x, p['w1'], p['b1'], activation='relu')
    return linear_add_ln(h, p['w2'], p['b2'], x, p['ln2_g'], p['ln2_b'])


def decoder_layer(x, mem, p, nh, self_kp, mem_kp):
    a = self_attn_block(x, p['self_attn'], nh, self_kp, causal=True)
    x = linear_add_ln(a, p['self_attn']['wo'], p['self_attn']['bo'],
                      x, p['ln1_g'], p['ln1_b'])
    c = cross_attn_block(x, mem, p['cross_attn'], nh, mem_kp)
    x = linear_add_ln(c, p['cross_attn']['wo'], p['cross_attn']['bo'],
                      x, p['ln2_g'], p['ln2_b'])
    h = linear(x, p['w1'], p['b1'], activation='relu')
    return linear_add_ln(h, p['w2'], p['b2'], x, p['ln3_g'], p['ln3_b'])


def diaact_transformer_forward(params, cfg, tgt_ids, tgt_key_padding_mask,
                               last_usr, last_sys, belief, db, turns):
    nh = cfg['n_heads']
    # src_embeds: rearrange 'S B E -> B S E'
    src = jnp.stack([last_usr, last_sys, belief, db], axis=1)              # (B, S, Ec)
    src = linear(src, params['src_proj_w'], params['src_proj_b'],
                 out_dtype=jnp.float32)                                    # (B, S, H)
    if cfg['add_encoder_turn_embedding']:
        src = src + jnp.take(params['encoder_turn_emb'], turns, axis=0)[:, None, :]
    if cfg['add_encoder_type_embedding']:
        src = src + params['encoder_type_emb'][:src.shape[1]][None, :, :]

    tgt = jnp.take(params['tgt_emb'], tgt_ids, axis=0)                     # (B, T, H)
    B, T, _ = tgt.shape
    if cfg['add_decoder_pos_embedding']:
        tgt = tgt + params['decoder_pos_emb'][:T][None, :, :]
    if cfg['add_decoder_type_embedding']:
        type_ids = jnp.arange(T) % 3
        tgt = tgt + jnp.take(params['decoder_type_emb'], type_ids, axis=0)[None, :, :]

    S = src.shape[1]
    # Tiny additive key-padding biases (0 / -1e30); causal mask built in-kernel.
    # Convention: 1 = valid (the PyTorch module inverts before nn.Transformer).
    if tgt_key_padding_mask is not None:
        self_kp = jnp.where(tgt_key_padding_mask.astype(bool), 0.0, NEG_INF)
        self_kp = self_kp.reshape(B, 1, T).astype(jnp.float32)
    else:
        self_kp = jnp.zeros((B, 1, T), jnp.float32)
    src_kp = jnp.zeros((B, 1, S), jnp.float32)   # no memory_key_padding_mask in ref

    mem = src.astype(jnp.bfloat16)
    for p in params['encoder_layers']:
        mem = encoder_layer(mem, p, nh, src_kp)
    mem = layer_norm(mem, params['enc_norm_g'], params['enc_norm_b'])      # bf16

    x = tgt.astype(jnp.bfloat16)
    for p in params['decoder_layers']:
        x = decoder_layer(x, mem, p, nh, self_kp, src_kp)
    x = layer_norm(x, params['dec_norm_g'], params['dec_norm_b'],
                   out_dtype=jnp.float32)                                  # hidden_states

    logits = linear(x, params['tgt_proj_w'], params['tgt_proj_b'],
                    out_dtype=jnp.float32)                                 # (B, T, V)
    loss = cross_entropy_mean(logits[:, :-1, :].reshape(-1, logits.shape[-1]),
                              tgt_ids[:, 1:].reshape(-1), cfg['pad_id'])
    return {'loss': loss, 'logits': logits, 'hidden_states': x}


# --------------------------------------------------------------------------
# deterministic parameter initialization (shapes from the module __init__)
# Matmul weights are stored in bf16 once at init (no per-call cast/copy).
# --------------------------------------------------------------------------

def _w(key, shape, dtype=jnp.bfloat16):
    return (jax.random.normal(key, shape, jnp.float32) * 0.02).astype(dtype)


def _self_attn_params(key, H):
    ks = jax.random.split(key, 4)
    w_qkv = jnp.concatenate([_w(ks[0], (H, H)), _w(ks[1], (H, H)),
                             _w(ks[2], (H, H))], axis=1)               # (H, 3H)
    return dict(w_qkv=w_qkv, b_qkv=jnp.zeros((3 * H,), jnp.float32),
                wo=_w(ks[3], (H, H)), bo=jnp.zeros((H,), jnp.float32))


def _cross_attn_params(key, H):
    ks = jax.random.split(key, 4)
    w_kv = jnp.concatenate([_w(ks[1], (H, H)), _w(ks[2], (H, H))], axis=1)  # (H, 2H)
    return dict(wq=_w(ks[0], (H, H)), bq=jnp.zeros((H,), jnp.float32),
                w_kv=w_kv, b_kv=jnp.zeros((2 * H,), jnp.float32),
                wo=_w(ks[3], (H, H)), bo=jnp.zeros((H,), jnp.float32))


def _enc_layer_params(key, H, F):
    ks = jax.random.split(key, 3)
    return dict(attn=_self_attn_params(ks[0], H),
                ln1_g=jnp.ones((H,), jnp.float32), ln1_b=jnp.zeros((H,), jnp.float32),
                w1=_w(ks[1], (H, F)), b1=jnp.zeros((F,), jnp.float32),
                w2=_w(ks[2], (F, H)), b2=jnp.zeros((H,), jnp.float32),
                ln2_g=jnp.ones((H,), jnp.float32), ln2_b=jnp.zeros((H,), jnp.float32))


def _dec_layer_params(key, H, F):
    ks = jax.random.split(key, 4)
    return dict(self_attn=_self_attn_params(ks[0], H),
                cross_attn=_cross_attn_params(ks[1], H),
                ln1_g=jnp.ones((H,), jnp.float32), ln1_b=jnp.zeros((H,), jnp.float32),
                ln2_g=jnp.ones((H,), jnp.float32), ln2_b=jnp.zeros((H,), jnp.float32),
                w1=_w(ks[2], (H, F)), b1=jnp.zeros((F,), jnp.float32),
                w2=_w(ks[3], (F, H)), b2=jnp.zeros((H,), jnp.float32),
                ln3_g=jnp.ones((H,), jnp.float32), ln3_b=jnp.zeros((H,), jnp.float32))


def init_params(key, cfg):
    V, Ec, H = cfg['vocab_size'], cfg['context_hidden_size'], cfg['hidden_size']
    F = 4 * H
    n_keys = 7 + cfg['n_encoder_layers'] + cfg['n_decoder_layers']
    ks = jax.random.split(key, n_keys)
    return dict(
        tgt_emb=_w(ks[0], (V, H), jnp.float32),
        src_proj_w=_w(ks[1], (Ec, H)), src_proj_b=jnp.zeros((H,), jnp.float32),
        encoder_turn_emb=_w(ks[2], (cfg['max_turn'], H), jnp.float32),
        encoder_type_emb=_w(ks[3], (4, H), jnp.float32),
        decoder_pos_emb=_w(ks[4], (cfg['max_resp_len'], H), jnp.float32),
        decoder_type_emb=_w(ks[5], (3, H), jnp.float32),
        tgt_proj_w=_w(ks[6], (H, V)), tgt_proj_b=jnp.zeros((V,), jnp.float32),
        enc_norm_g=jnp.ones((H,), jnp.float32), enc_norm_b=jnp.zeros((H,), jnp.float32),
        dec_norm_g=jnp.ones((H,), jnp.float32), dec_norm_b=jnp.zeros((H,), jnp.float32),
        encoder_layers=[_enc_layer_params(ks[7 + i], H, F)
                        for i in range(cfg['n_encoder_layers'])],
        decoder_layers=[_dec_layer_params(ks[7 + cfg['n_encoder_layers'] + i], H, F)
                        for i in range(cfg['n_decoder_layers'])],
    )


if __name__ == "__main__":
    cfg = dict(vocab_size=64, context_hidden_size=16, hidden_size=32, n_heads=4,
               n_encoder_layers=2, n_decoder_layers=2,
               add_encoder_turn_embedding=True, add_encoder_type_embedding=True,
               add_decoder_pos_embedding=True, add_decoder_type_embedding=True,
               max_turn=20, max_resp_len=256, pad_id=0)

    key = jax.random.PRNGKey(0)
    pkey, dkey = jax.random.split(key)
    params = init_params(pkey, cfg)

    B, T = 2, 8
    ks = jax.random.split(dkey, 6)
    tgt_ids = jax.random.randint(ks[0], (B, T), 1, cfg['vocab_size'])
    tgt_ids = tgt_ids.at[1, -2:].set(cfg['pad_id'])                 # exercise padding
    tgt_key_padding_mask = (tgt_ids != cfg['pad_id']).astype(jnp.int32)  # 1 = valid
    last_usr = jax.random.normal(ks[1], (B, cfg['context_hidden_size']), jnp.float32)
    last_sys = jax.random.normal(ks[2], (B, cfg['context_hidden_size']), jnp.float32)
    belief = jax.random.normal(ks[3], (B, cfg['context_hidden_size']), jnp.float32)
    db = jax.random.normal(ks[4], (B, cfg['context_hidden_size']), jnp.float32)
    turns = jax.random.randint(ks[5], (B,), 0, cfg['max_turn'])

    out = diaact_transformer_forward(params, cfg, tgt_ids, tgt_key_padding_mask,
                                     last_usr, last_sys, belief, db, turns)
    jax.block_until_ready(out['logits'])
    jax.block_until_ready(out['loss'])

    assert out['logits'].shape == (B, T, cfg['vocab_size'])
    assert out['hidden_states'].shape == (B, T, cfg['hidden_size'])
    assert bool(jnp.isfinite(out['loss']))
    print("KERNEL_OK")
</pallas_src>

<mosaic_0001>
module attributes {stable_mosaic.version = 11 : i64} {
  func.func @_linear_kernel(%arg0: i32, %arg1: i32, %arg2: i32, %arg3: memref<8x16xbf16, #tpu.memory_space<vmem>>, %arg4: memref<16x32xbf16, #tpu.memory_space<vmem>>, %arg5: memref<1x32xf32, #tpu.memory_space<vmem>>, %arg6: memref<8x32xf32, #tpu.memory_space<vmem>>, %arg7: memref<8x32xf32, #tpu.memory_space<vmem>>) attributes {dimension_semantics = [#tpu.dimension_semantics<parallel>, #tpu.dimension_semantics<parallel>, #tpu.dimension_semantics<arbitrary>], iteration_bounds = array<i64: 1, 1, 1>, scalar_prefetch = 0 : i64, scratch_operands = 1 : i64, tpu.core_type = #tpu.core_type<tc>, window_params = [{transform_indices = @transform_0, window_bounds = array<i64: 8, 16>}, {transform_indices = @transform_1, window_bounds = array<i64: 16, 32>}, {transform_indices = @transform_2, window_bounds = array<i64: 1, 32>}, {transform_indices = @transform_3, window_bounds = array<i64: 8, 32>}]} {
    %c0_i32 = arith.constant 0 : i32
    %0 = arith.cmpi eq, %arg2, %c0_i32 : i32
    %1 = arith.extui %0 : i1 to i32
    %c0_i32_0 = arith.constant 0 : i32
    %2 = arith.cmpi ne, %1, %c0_i32_0 : i32
    scf.if %2 {
      %cst_10 = arith.constant 0.000000e+00 : f32
      %12 = vector.broadcast %cst_10 : f32 to vector<8x32xf32>
      %c0_11 = arith.constant 0 : index
      %c0_12 = arith.constant 0 : index
      %13 = vector.load %arg7[%c0_11, %c0_12] : memref<8x32xf32, #tpu.memory_space<vmem>>, vector<8x32xf32>
      tpu.vector_store %arg7[%c0_11, %c0_12], %12 {strides = array<i32>} : memref<8x32xf32, #tpu.memory_space<vmem>>, vector<8x32xf32>,
    } else {
    }
    %c0 = arith.constant 0 : index
    %c0_1 = arith.constant 0 : index
    %3 = vector.load %arg7[%c0, %c0_1] : memref<8x32xf32, #tpu.memory_space<vmem>>, vector<8x32xf32>
    %c0_2 = arith.constant 0 : index
    %c0_3 = arith.constant 0 : index
    %4 = vector.load %arg3[%c0_2, %c0_3] : memref<8x16xbf16, #tpu.memory_space<vmem>>, vector<8x16xbf16>
    %c0_4 = arith.constant 0 : index
    %c0_5 = arith.constant 0 : index
    %5 = vector.load %arg4[%c0_4, %c0_5] : memref<16x32xbf16, #tpu.memory_space<vmem>>, vector<16x32xbf16>
    %cst = arith.constant dense<0.000000e+00> : vector<8x32xf32>
    %6 = tpu.matmul %4, %5, %cst {dimension_numbers = #tpu.dot_dimension_numbers<[1], [0], [0], [1], [0, 0, 1, 1], [], []>} : vector<8x16xbf16>, vector<16x32xbf16>, vector<8x32xf32> -> vector<8x32xf32>
    %7 = arith.addf %3, %6 : vector<8x32xf32>
    %c0_6 = arith.constant 0 : index
    %c0_7 = arith.constant 0 : index
    %8 = vector.load %arg7[%c0_6, %c0_7] : memref<8x32xf32, #tpu.memory_space<vmem>>, vector<8x32xf32>
    tpu.vector_store %arg7[%c0_6, %c0_7], %7 {strides = array<i32>} : memref<8x32xf32, #tpu.memory_space<vmem>>, vector<8x32xf32>,
    %c0_i32_8 = arith.constant 0 : i32
    %9 = arith.cmpi eq, %arg2, %c0_i32_8 : i32
    %10 = arith.extui %9 : i1 to i32
    %c0_i32_9 = arith.constant 0 : i32
    %11 = arith.cmpi ne, %10, %c0_i32_9 : i32
    scf.if %11 {
      %c0_10 = arith.constant 0 : index
      %c0_11 = arith.constant 0 : index
      %12 = vector.load %arg7[%c0_10, %c0_11] : memref<8x32xf32, #tpu.memory_space<vmem>>, vector<8x32xf32>
      %c0_12 = arith.constant 0 : index
      %c0_13 = arith.constant 0 : index
      %13 = vector.load %arg5[%c0_12, %c0_13] : memref<1x32xf32, #tpu.memory_space<vmem>>, vector<1x32xf32>
      %14 = vector.broadcast %13 : vector<1x32xf32> to vector<8x32xf32>
      %15 = arith.addf %12, %14 : vector<8x32xf32>
      %c0_14 = arith.constant 0 : index
      %c0_15 = arith.constant 0 : index
      %16 = vector.load %arg6[%c0_14, %c0_15] : memref<8x32xf32, #tpu.memory_space<vmem>>, vector<8x32xf32>
      tpu.vector_store %arg6[%c0_14, %c0_15], %15 {strides = array<i32>} : memref<8x32xf32, #tpu.memory_space<vmem>>, vector<8x32xf32>,
    } else {
    }
    return
  }
  func.func @transform_0(%arg0: i32, %arg1: i32, %arg2: i32) -> (i32, i32) {
    %c0_i32 = arith.constant 0 : i32
    return %arg0, %arg2 : i32, i32
  }
  func.func @transform_1(%arg0: i32, %arg1: i32, %arg2: i32) -> (i32, i32) {
    %c0_i32 = arith.constant 0 : i32
    return %arg2, %arg1 : i32, i32
  }
  func.func @transform_2(%arg0: i32, %arg1: i32, %arg2: i32) -> (i32, i32) {
    %c0_i32 = arith.constant 0 : i32
    %c0_i32_0 = arith.constant 0 : i32
    return %c0_i32, %arg1 : i32, i32
  }
  func.func @transform_3(%arg0: i32, %arg1: i32, %arg2: i32) -> (i32, i32) {
    %c0_i32 = arith.constant 0 : i32
    return %arg0, %arg1 : i32, i32
  }
}

</mosaic_0001>

<llo_original>
// kernel: tpu_custom_call.1
$region0: #{tpu_custom_call.1}
  #allocation0 [shape = 'u32[]', space=smem, size = 0x4, offset = 0x4, fixed_abs, tag = 'smem constant byte address 0x4 - core index']
  #allocation1 [shape = 'u32[144,128]{1,0:T(1,128)}', space=vmem, size = 0x12000, scoped, tag = 'internal scratch']
  #allocation2 [shape = 'f32[8,32]{1,0:T(8,128)}', space=vmem, size = 0x1000, scoped, tag = 'scratch operand']
  %s0 = inlined_call_operand.hbm [shape: bf16[8,16], index: 0, kind: input, shape index: {}]
  %s1 = inlined_call_operand.hbm [shape: bf16[16,32], index: 1, kind: input, shape index: {}]
  %s2 = inlined_call_operand.vmem [shape: f32[1,32], index: 2, kind: input, shape index: {}]
  %s3 = inlined_call_operand.hbm [shape: f32[8,32], index: 3, kind: output, shape index: {}]
  %s4 = sld [smem:[#allocation0]]
  $region38: #{tpu_custom_call.1} parent=0
    _
  %s6 = ssub.s32 1, %s4
  %s7 = scalar_select 0, %s6, %s4
  $region1: #{tpu_custom_call.1} parent=0
    #allocation3 [shape = 'u8[2048]{0}', space=vmem, size = 0x800, scoped, tag = 'input window, operand 0, single buffered']
    #allocation4 [shape = 's32[1]{0}', space=sflag, size = 0x4, scoped, tag = 'scoped memory for tpu_custom_call.1']
    #allocation5 [shape = 's32[1]{0}', space=sflag, size = 0x4, scoped, tag = 'scoped memory for tpu_custom_call.1']
    #allocation6 [shape = 'u8[4096]{0}', space=vmem, size = 0x1000, scoped, tag = 'input window, operand 1, single buffered']
    #allocation7 [shape = 's32[1]{0}', space=sflag, size = 0x4, scoped, tag = 'scoped memory for tpu_custom_call.1']
    #allocation8 [shape = 'u8[4096]{0}', space=vmem, size = 0x1000, scoped, tag = 'output window, operand 0, single buffered']
    %8 = vsyncpa [#allocation4], 0
    %9 = vsyncpa [#allocation7], 0
    %10 = vsyncpa [#allocation5], 0
    // Predicated region
    $region2: #{tpu_custom_call.1} parent=1 // pred_check
      _
    $region3: #{tpu_custom_call.1} parent=1 // pred_check_branch
      %12 = sbr.rel (0) target = $region5
    $region4: #{tpu_custom_call.1} parent=1 // pred_region
      %s14 = ssub.s32 64, 64
      %15 = vsyncadd [#allocation4], %s14
      %s17 = sshll.u32 [#allocation3], 4
      %s18 = int_to_ptr.vmem [resolvable:$true] %s17
      %20 = dma.hbm_to_vmem [thread:$0]  %s0, 64, %s18, [#allocation4]
    $region5: #{tpu_custom_call.1} parent=1 // pred_fallthru
      _
    // Predicated region
    $region6: #{tpu_custom_call.1} parent=1 // pred_check
      _
    $region7: #{tpu_custom_call.1} parent=1 // pred_check_branch
      %22 = sbr.rel (0) target = $region9
    $region8: #{tpu_custom_call.1} parent=1 // pred_region
      %s24 = ssub.s32 128, 128
      %25 = vsyncadd [#allocation7], %s24
      %s26 = sshll.u32 [#allocation6], 4
      %s27 = int_to_ptr.vmem [resolvable:$true] %s26
      %32 = dma.hbm_to_vmem [thread:$0]  %s1, 128, %s27, [#allocation7], 64, 64, 4
    $region9: #{tpu_custom_call.1} parent=1 // pred_fallthru
      _
    // Predicated region
    $region10: #{tpu_custom_call.1} parent=1 // pred_check
      _
    $region11: #{tpu_custom_call.1} parent=1 // pred_check_branch
      %34 = sbr.rel (0) target = $region13
    $region12: #{tpu_custom_call.1} parent=1 // pred_region
      _
    $region13: #{tpu_custom_call.1} parent=1 // pred_fallthru
      _
    // Predicated region
    $region14: #{tpu_custom_call.1} parent=1 // pred_check
      _
    $region15: #{tpu_custom_call.1} parent=1 // pred_check_branch
      %36 = sbr.rel (0) target = $region17
    $region16: #{tpu_custom_call.1} parent=1 // pred_region
      %37 = dma.done [#allocation4], 64
    $region17: #{tpu_custom_call.1} parent=1 // pred_fallthru
      _
    // Predicated region
    $region18: #{tpu_custom_call.1} parent=1 // pred_check
      _
    $region19: #{tpu_custom_call.1} parent=1 // pred_check_branch
      %39 = sbr.rel (0) target = $region21
    $region20: #{tpu_custom_call.1} parent=1 // pred_region
      %40 = dma.done [#allocation7], 128
    $region21: #{tpu_custom_call.1} parent=1 // pred_fallthru
      _
    %p42 = scmp.eq.s32.totalorder 0, 0
    // Predicated region
    $region22: #{tpu_custom_call.1} parent=1 // pred_check
      %p43 = pneg %p42
    $region23: #{tpu_custom_call.1} parent=1 // pred_check_branch
      %45 = sbr.rel (%p43) target = $region25
    $region24: #{tpu_custom_call.1} parent=1 // pred_region
      %vm46 = vcmask 261120
      %47 = vst.msk [vmem:[#allocation2] sm:$0xff] %vm46, 0.0
    $region25: #{tpu_custom_call.1} parent=1 // pred_fallthru
      _
    %v48 = vld [vmem:[#allocation2] sm:$0xff]
    %v49 = vld [vmem:[#allocation3] sm:$0xf]
    %v50 = vld [vmem:[#allocation6] sm:$0xf]
    %v51 = vld [vmem:[#allocation6 + $0x4] sm:$0xf]
    %v54 = vunpack.c.l.b16 %v50
    %v55 = vunpack.c.l.b16 %v51
    %v56 = vpack.c.b16 %v55, %v54
    %vm58 = vcmask 130048
    %v60 = vsel %vm58, %v49, 0
    %62 = vmatprep.subr.bf16.mxu0 0
    %63 = vmatpush1.bf16.msra.mxu0 0
    %64 = vmatprep.subr.bf16.mxu0 0
    %65 = vmatpush1.bf16.msra.mxu0 0
    %66 = vmatprep.subr.bf16.mxu0 0
    %67 = vmatpush1.bf16.msra.mxu0 0
    %68 = vmatprep.subr.bf16.mxu0 0
    %69 = vmatpush1.bf16.msra.mxu0 0
    %70 = vmatprep.subr.bf16.mxu0 0
    %71 = vmatpush1.bf16.msra.mxu0 0
    %72 = vmatprep.subr.bf16.mxu0 0
    %73 = vmatpush1.bf16.msra.mxu0 0
    %74 = vmatprep.subr.bf16.mxu0 0
    %75 = vmatpush1.bf16.msra.mxu0 0
    %76 = vmatprep.subr.bf16.mxu0 0
    %77 = vmatpush1.bf16.msra.mxu0 %v56
    %78 = vmatprep.subr.bf16.mxu0 0
    %79 = vmatpush2.bf16.msra.mxu0 0
    %80 = vmatprep.subr.bf16.mxu0 0
    %81 = vmatpush2.bf16.msra.mxu0 0
    %82 = vmatprep.subr.bf16.mxu0 0
    %83 = vmatpush2.bf16.msra.mxu0 0
    %84 = vmatprep.subr.bf16.mxu0 0
    %85 = vmatpush2.bf16.msra.mxu0 0
    %86 = vmatprep.subr.bf16.mxu0 0
    %87 = vmatpush2.bf16.msra.mxu0 0
    %88 = vmatprep.subr.bf16.mxu0 0
    %89 = vmatpush2.bf16.msra.mxu0 0
    %90 = vmatprep.subr.bf16.mxu0 0
    %91 = vmatpush2.bf16.msra.mxu0 0
    %92 = vmatprep.subr.bf16.mxu0 0
    %93 = vmatpush2.bf16.msra.mxu0 0
    %94 = vmatprep.mubr.bf16.mxu0 0
    %95 = vmatmul.mubr.bf16.gmra.mxu0 %v60
    %v96 = vpop.f32.mrf.mxu0
    %v97 = vadd.f32 0.0, %v96
    %v98 = vpop.f32.mrf.mxu0
    %v99 = vpop.f32.mrf.mxu0
    %v100 = vpop.f32.mrf.mxu0
    %101 = vdwg.mxu0
    %v102 = vadd.f32 %v48, %v97
    %vm103 = vcmask 261120
    %104 = vst.msk [vmem:[#allocation2] sm:$0xff] %vm103, %v102
    // Predicated region
    $region26: #{tpu_custom_call.1} parent=1 // pred_check
      %p105 = pneg %p42
    $region27: #{tpu_custom_call.1} parent=1 // pred_check_branch
      %107 = sbr.rel (%p105) target = $region29
    $region28: #{tpu_custom_call.1} parent=1 // pred_region
      %v108 = vld [vmem:[#allocation2] sm:$0xff]
      %v109 = vld [vmem:[%s2] sm:$0x1]
      %v111 = vlaneseq
      %v112 = vshrl.u32 %v111, 7
      %v113 = vsub.s32 0, %v112
      %v114 = vrot.slane %v109, %v113
      %v116 = vadd.f32 %v108, %v114
      %117 = vst.msk [vmem:[#allocation8] sm:$0xff] %vm103, %v116
    $region29: #{tpu_custom_call.1} parent=1 // pred_fallthru
      _
    // Predicated region
    $region30: #{tpu_custom_call.1} parent=1 // pred_check
      _
    $region31: #{tpu_custom_call.1} parent=1 // pred_check_branch
      %119 = sbr.rel (0) target = $region33
    $region32: #{tpu_custom_call.1} parent=1 // pred_region
      %s121 = ssub.s32 128, 128
      %122 = vsyncadd [#allocation5], %s121
      %s124 = sshll.u32 [#allocation8], 4
      %s125 = int_to_ptr.vmem [resolvable:$true] %s124
      %127 = dma.vmem_to_hbm [thread:$0]  %s125, 128, %s3, [#allocation5]
    $region33: #{tpu_custom_call.1} parent=1 // pred_fallthru
      _
    // Predicated region
    $region34: #{tpu_custom_call.1} parent=1 // pred_check
      _
    $region35: #{tpu_custom_call.1} parent=1 // pred_check_branch
      %129 = sbr.rel (0) target = $region37
    $region36: #{tpu_custom_call.1} parent=1 // pred_region
      %130 = dma.done [#allocation5], 128
    $region37: #{tpu_custom_call.1} parent=1 // pred_fallthru
      _
    %131 = vsyncpa [#allocation4], 1
    %132 = vsyncpa [#allocation7], 1
    %133 = vsyncpa [#allocation5], 1

</llo_original>
